<compile_context>
chip_gen: v6e
topology: v6e:2x2x1
jax: 0.10.0
libtpu: 0.0.40
codegen_flags: <defaults>
</compile_context>

<pallas_src>
import functools

import jax
import jax.numpy as jnp
from jax.experimental import pallas as pl
from jax.experimental.pallas import tpu as pltpu


def _round_up(n, m):
    return ((n + m - 1) // m) * m


# ---------------------------------------------------------------------------
# Feature probe: can grid-resident operands be single-buffered via
# pipeline_mode=pl.Buffered(1)?  Probed once with a tiny kernel; falls back to
# default double-buffering if unsupported so the forward always runs.
# ---------------------------------------------------------------------------
_BUFFERED_SUPPORTED = None


def _probe_buffered_support():
    global _BUFFERED_SUPPORTED
    if _BUFFERED_SUPPORTED is not None:
        return _BUFFERED_SUPPORTED

    def _copy_kernel(x_ref, o_ref):
        o_ref[...] = x_ref[...]

    try:
        spec = pl.BlockSpec((8, 128), lambda i: (0, 0), pipeline_mode=pl.Buffered(1))
        out = pl.pallas_call(
            _copy_kernel,
            out_shape=jax.ShapeDtypeStruct((8, 128), jnp.float32),
            grid=(2,),
            in_specs=[spec],
            out_specs=pl.BlockSpec((8, 128), lambda i: (0, 0)),
        )(jnp.zeros((8, 128), jnp.float32))
        jax.block_until_ready(out)
        _BUFFERED_SUPPORTED = True
    except Exception:
        _BUFFERED_SUPPORTED = False
    return _BUFFERED_SUPPORTED


def _resident_spec(block_shape, use_buffered):
    """BlockSpec for an operand whose block never changes across the grid."""
    index_map = lambda i: tuple(0 for _ in block_shape)
    if use_buffered:
        return pl.BlockSpec(block_shape, index_map, pipeline_mode=pl.Buffered(1))
    return pl.BlockSpec(block_shape, index_map)


# ---------------------------------------------------------------------------
# Kernel: whole MLP on one batch tile.  refs = (x, w0, b0, ..., out).
#   x:   (tm, in_f)            f32   (cast to bf16 in-kernel)
#   w_l: (W_l, W_{l+1})        bf16  (resident across the batch grid)
#   b_l: (1,  W_{l+1})         f32
#   out: (tm, W_last)          f32   (lane-dense, 128-padded)
# ---------------------------------------------------------------------------
def _mlp_fused_kernel(*refs, n_layers):
    x_ref = refs[0]
    o_ref = refs[1 + 2 * n_layers]

    h = x_ref[...].astype(jnp.bfloat16)            # MXU operand
    for l in range(n_layers):
        w_ref = refs[1 + 2 * l]
        b_ref = refs[2 + 2 * l]
        # MXU: bf16 x bf16 -> f32 accumulate
        y = jnp.dot(h, w_ref[...], preferred_element_type=jnp.float32)
        y = y + b_ref[...]
        if l < n_layers - 1:
            # Swish(y) = y * sigmoid(y); sigmoid via one tanh (single EUP push)
            y = y * (0.5 * jnp.tanh(0.5 * y) + 0.5)
            h = y.astype(jnp.bfloat16)             # bf16 inter-layer activation, VMEM only
        else:
            o_ref[...] = y.astype(o_ref.dtype)


def mlp_forward_pallas(x, padded_params, *, out_features, tm_max=512,
                       use_buffered=False):
    """x: [N, in_features] f32; padded_params: flat [w0, b0, w1, b1, ...] with
    w_l bf16 [W_l, W_{l+1}] (128-padded feature dims) and b_l f32 [1, W_{l+1}]."""
    n, in_f = x.shape
    n_layers = len(padded_params) // 2
    widths = [in_f] + [padded_params[2 * l].shape[1] for l in range(n_layers)]

    # Batch tiling: balanced tiles; >=2 grid steps when enough rows (v7x megacore,
    # deeper x/out DMA pipeline), >=4 for large N.
    n_rows = _round_up(n, 8)
    min_tiles = 1
    if n_rows >= 256:
        min_tiles = 2
    if n_rows >= 1024:
        min_tiles = 4
    num_tiles = max(-(-n_rows // tm_max), min_tiles)
    tm = _round_up(-(-n_rows // num_tiles), 16)
    n_pad = _round_up(n, tm)

    if n_pad != n:
        x = jnp.pad(x, ((0, n_pad - n), (0, 0)))   # rows only; no feature pad/cast

    in_specs = [pl.BlockSpec((tm, in_f), lambda i: (i, 0))]
    for l in range(n_layers):
        in_specs.append(_resident_spec(padded_params[2 * l].shape, use_buffered))
        in_specs.append(_resident_spec(padded_params[2 * l + 1].shape, use_buffered))

    # Explicit VMEM budget: resident weights/biases (x2 if double-buffered),
    # double-buffered x/out tiles, inter-layer activation temporaries, + headroom.
    w_bytes = sum(int(p.size) * p.dtype.itemsize for p in padded_params)
    w_bytes *= 1 if use_buffered else 2
    io_bytes = 2 * tm * in_f * 4 + 2 * tm * widths[-1] * 4
    act_bytes = tm * max(widths) * (4 + 2)
    vmem_limit = min(100 << 20,
                     max(32 << 20,
                         int(1.25 * (w_bytes + io_bytes + act_bytes)) + (2 << 20)))
    # TODO(synk): if resident bf16 weights alone exceed ~56 MiB (v7x 64 MiB VMEM),
    # fall back to per-layer pallas_calls or tile the widest layer's output dim.

    kernel = functools.partial(_mlp_fused_kernel, n_layers=n_layers)
    out = pl.pallas_call(
        kernel,
        out_shape=jax.ShapeDtypeStruct((n_pad, widths[-1]), jnp.float32),
        grid=(n_pad // tm,),
        in_specs=in_specs,
        out_specs=pl.BlockSpec((tm, widths[-1]), lambda i: (i, 0)),
        compiler_params=pltpu.CompilerParams(
            dimension_semantics=("parallel",),
            vmem_limit_bytes=vmem_limit,
        ),
    )(x, *padded_params)
    return out[:n, :out_features]


class MLP:
    """JAX/Pallas port of the PyTorch MLP:
    [Linear -> Swish] * len(hidden_features) followed by a final Linear.
    Parameters use PyTorch-style uniform fan-in init (init_mode=None behaviour)."""

    def __init__(self, in_features, hidden_features, out_features, key):
        # TODO(synk): spectral-norm (sn=True in `linear`) has no clean single-kernel
        # Pallas equivalent; plain linear layers are used here.
        features = [in_features] + list(hidden_features) + [out_features]
        self.in_features = in_features
        self.out_features = out_features
        self.params = []           # unpadded f32 params (reference / export)
        padded = []                # pre-padded/pre-cast kernel operands (built ONCE)
        prev_pad = in_features     # first layer contracts against unpadded x
        for i in range(len(features) - 1):
            fan_in, fan_out = features[i], features[i + 1]
            key, kw, kb = jax.random.split(key, 3)
            bound = 1.0 / jnp.sqrt(fan_in)
            # stored as [in, out] (transposed relative to torch's [out, in])
            w = jax.random.uniform(kw, (fan_in, fan_out), jnp.float32,
                                   minval=-bound, maxval=bound)
            b = jax.random.uniform(kb, (1, fan_out), jnp.float32,
                                   minval=-bound, maxval=bound)
            self.params.append((w, b))

            out_pad = _round_up(fan_out, 128)
            w_p = jnp.pad(w, ((0, prev_pad - fan_in), (0, out_pad - fan_out))
                          ).astype(jnp.bfloat16)
            b_p = jnp.pad(b, ((0, 0), (0, out_pad - fan_out))).astype(jnp.float32)
            padded += [w_p, b_p]
            prev_pad = out_pad
        self._padded_params = padded

        self._use_buffered = _probe_buffered_support()
        self._fwd = jax.jit(functools.partial(
            mlp_forward_pallas,
            out_features=out_features,
            use_buffered=self._use_buffered,
        ))

    def __call__(self, x):
        return self._fwd(x, self._padded_params)


def _reference(x, params):
    """Plain-JAX reference with matching numerics (bf16 MXU inputs, f32 accumulate)."""
    ref = x
    for i, (w, b) in enumerate(params):
        ref = jnp.dot(ref.astype(jnp.bfloat16), w.astype(jnp.bfloat16),
                      preferred_element_type=jnp.float32) + b
        if i != len(params) - 1:
            ref = ref * jax.nn.sigmoid(ref)
    return ref


if __name__ == "__main__":
    key = jax.random.PRNGKey(0)
    key, xkey, pkey = jax.random.split(key, 3)

    # small, forward-consistent shapes: batch=8, in=16, hidden=[32, 32], out=8
    batch, in_features, hidden_features, out_features = 8, 16, [32, 32], 8
    x = jax.random.normal(xkey, (batch, in_features), jnp.float32)

    mlp = MLP(in_features, hidden_features, out_features, pkey)
    y = jax.block_until_ready(mlp(x))
    assert y.shape == (batch, out_features)
    ref = _reference(x, mlp.params)
    assert jnp.allclose(y, ref, atol=2e-3, rtol=2e-3), float(jnp.max(jnp.abs(y - ref)))

    # second shape: exercises batch tiling (grid = 2) and ragged-row padding
    x2 = jax.random.normal(key, (1000, in_features), jnp.float32)
    y2 = jax.block_until_ready(mlp(x2))
    ref2 = _reference(x2, mlp.params)
    assert y2.shape == (1000, out_features)
    assert jnp.allclose(y2, ref2, atol=2e-3, rtol=2e-3), float(jnp.max(jnp.abs(y2 - ref2)))

    print("KERNEL_OK")
</pallas_src>

<mosaic_0001>
module attributes {stable_mosaic.version = 11 : i64} {
  func.func @_copy_kernel(%arg0: i32, %arg1: memref<8x128xf32, #tpu.memory_space<vmem>>, %arg2: memref<8x128xf32, #tpu.memory_space<vmem>>) attributes {dimension_semantics = [#tpu.dimension_semantics<arbitrary>], iteration_bounds = array<i64: 2>, scalar_prefetch = 0 : i64, scratch_operands = 0 : i64, tpu.core_type = #tpu.core_type<tc>, window_params = [{pipeline_mode = #tpu.pipeline_mode<synchronous>, transform_indices = @transform_0, window_bounds = array<i64: 8, 128>}, {pipeline_mode = #tpu.pipeline_mode<synchronous>, transform_indices = @transform_1, window_bounds = array<i64: 8, 128>}]} {
    %c0 = arith.constant 0 : index
    %c0_0 = arith.constant 0 : index
    %0 = vector.load %arg1[%c0, %c0_0] : memref<8x128xf32, #tpu.memory_space<vmem>>, vector<8x128xf32>
    %c0_1 = arith.constant 0 : index
    %c0_2 = arith.constant 0 : index
    %1 = vector.load %arg2[%c0_1, %c0_2] : memref<8x128xf32, #tpu.memory_space<vmem>>, vector<8x128xf32>
    tpu.vector_store %arg2[%c0_1, %c0_2], %0 {strides = array<i32>} : memref<8x128xf32, #tpu.memory_space<vmem>>, vector<8x128xf32>,
    return
  }
  func.func @transform_0(%arg0: i32) -> (i32, i32) {
    %c0_i32 = arith.constant 0 : i32
    %c0_i32_0 = arith.constant 0 : i32
    %c0_i32_1 = arith.constant 0 : i32
    return %c0_i32, %c0_i32_0 : i32, i32
  }
  func.func @transform_1(%arg0: i32) -> (i32, i32) {
    %c0_i32 = arith.constant 0 : i32
    %c0_i32_0 = arith.constant 0 : i32
    %c0_i32_1 = arith.constant 0 : i32
    return %c0_i32, %c0_i32_0 : i32, i32
  }
}

module attributes {stable_mosaic.version = 11 : i64} {
  func.func @_mlp_fused_kernel(%arg0: i32, %arg1: memref<16x16xf32, #tpu.memory_space<vmem>>, %arg2: memref<16x128xbf16, #tpu.memory_space<vmem>>, %arg3: memref<1x128xf32, #tpu.memory_space<vmem>>, %arg4: memref<128x128xbf16, #tpu.memory_space<vmem>>, %arg5: memref<1x128xf32, #tpu.memory_space<vmem>>, %arg6: memref<128x128xbf16, #tpu.memory_space<vmem>>, %arg7: memref<1x128xf32, #tpu.memory_space<vmem>>, %arg8: memref<16x128xf32, #tpu.memory_space<vmem>>) attributes {dimension_semantics = [#tpu.dimension_semantics<parallel>], iteration_bounds = array<i64: 1>, scalar_prefetch = 0 : i64, scratch_operands = 0 : i64, tpu.core_type = #tpu.core_type<tc>, window_params = [{transform_indices = @transform_0, window_bounds = array<i64: 16, 16>}, {pipeline_mode = #tpu.pipeline_mode<synchronous>, transform_indices = @transform_1, window_bounds = array<i64: 16, 128>}, {pipeline_mode = #tpu.pipeline_mode<synchronous>, transform_indices = @transform_2, window_bounds = array<i64: 1, 128>}, {pipeline_mode = #tpu.pipeline_mode<synchronous>, transform_indices = @transform_3, window_bounds = array<i64: 128, 128>}, {pipeline_mode = #tpu.pipeline_mode<synchronous>, transform_indices = @transform_4, window_bounds = array<i64: 1, 128>}, {pipeline_mode = #tpu.pipeline_mode<synchronous>, transform_indices = @transform_5, window_bounds = array<i64: 128, 128>}, {pipeline_mode = #tpu.pipeline_mode<synchronous>, transform_indices = @transform_6, window_bounds = array<i64: 1, 128>}, {transform_indices = @transform_7, window_bounds = array<i64: 16, 128>}]} {
    %c0 = arith.constant 0 : index
    %c0_0 = arith.constant 0 : index
    %0 = vector.load %arg1[%c0, %c0_0] : memref<16x16xf32, #tpu.memory_space<vmem>>, vector<16x16xf32>
    %1 = arith.truncf %0 : vector<16x16xf32> to vector<16x16xbf16>
    %c0_1 = arith.constant 0 : index
    %c0_2 = arith.constant 0 : index
    %2 = vector.load %arg2[%c0_1, %c0_2] : memref<16x128xbf16, #tpu.memory_space<vmem>>, vector<16x128xbf16>
    %cst = arith.constant dense<0.000000e+00> : vector<16x128xf32>
    %3 = tpu.matmul %1, %2, %cst {dimension_numbers = #tpu.dot_dimension_numbers<[1], [0], [0], [1], [0, 0, 1, 1], [], []>} : vector<16x16xbf16>, vector<16x128xbf16>, vector<16x128xf32> -> vector<16x128xf32>
    %c0_3 = arith.constant 0 : index
    %c0_4 = arith.constant 0 : index
    %4 = vector.load %arg3[%c0_3, %c0_4] : memref<1x128xf32, #tpu.memory_space<vmem>>, vector<1x128xf32>
    %5 = vector.broadcast %4 : vector<1x128xf32> to vector<16x128xf32>
    %6 = arith.addf %3, %5 : vector<16x128xf32>
    %cst_5 = arith.constant 5.000000e-01 : f32
    %7 = vector.broadcast %cst_5 : f32 to vector<16x128xf32>
    %8 = arith.mulf %7, %6 : vector<16x128xf32>
    %9 = math.tanh %8 : vector<16x128xf32>
    %cst_6 = arith.constant 5.000000e-01 : f32
    %10 = vector.broadcast %cst_6 : f32 to vector<16x128xf32>
    %11 = arith.mulf %10, %9 : vector<16x128xf32>
    %cst_7 = arith.constant 5.000000e-01 : f32
    %12 = vector.broadcast %cst_7 : f32 to vector<16x128xf32>
    %13 = arith.addf %11, %12 : vector<16x128xf32>
    %14 = arith.mulf %6, %13 : vector<16x128xf32>
    %15 = arith.truncf %14 : vector<16x128xf32> to vector<16x128xbf16>
    %c0_8 = arith.constant 0 : index
    %c0_9 = arith.constant 0 : index
    %16 = vector.load %arg4[%c0_8, %c0_9] : memref<128x128xbf16, #tpu.memory_space<vmem>>, vector<128x128xbf16>
    %cst_10 = arith.constant dense<0.000000e+00> : vector<16x128xf32>
    %17 = tpu.matmul %15, %16, %cst_10 {dimension_numbers = #tpu.dot_dimension_numbers<[1], [0], [0], [1], [0, 0, 1, 1], [], []>} : vector<16x128xbf16>, vector<128x128xbf16>, vector<16x128xf32> -> vector<16x128xf32>
    %c0_11 = arith.constant 0 : index
    %c0_12 = arith.constant 0 : index
    %18 = vector.load %arg5[%c0_11, %c0_12] : memref<1x128xf32, #tpu.memory_space<vmem>>, vector<1x128xf32>
    %19 = vector.broadcast %18 : vector<1x128xf32> to vector<16x128xf32>
    %20 = arith.addf %17, %19 : vector<16x128xf32>
    %cst_13 = arith.constant 5.000000e-01 : f32
    %21 = vector.broadcast %cst_13 : f32 to vector<16x128xf32>
    %22 = arith.mulf %21, %20 : vector<16x128xf32>
    %23 = math.tanh %22 : vector<16x128xf32>
    %cst_14 = arith.constant 5.000000e-01 : f32
    %24 = vector.broadcast %cst_14 : f32 to vector<16x128xf32>
    %25 = arith.mulf %24, %23 : vector<16x128xf32>
    %cst_15 = arith.constant 5.000000e-01 : f32
    %26 = vector.broadcast %cst_15 : f32 to vector<16x128xf32>
    %27 = arith.addf %25, %26 : vector<16x128xf32>
    %28 = arith.mulf %20, %27 : vector<16x128xf32>
    %29 = arith.truncf %28 : vector<16x128xf32> to vector<16x128xbf16>
    %c0_16 = arith.constant 0 : index
    %c0_17 = arith.constant 0 : index
    %30 = vector.load %arg6[%c0_16, %c0_17] : memref<128x128xbf16, #tpu.memory_space<vmem>>, vector<128x128xbf16>
    %cst_18 = arith.constant dense<0.000000e+00> : vector<16x128xf32>
    %31 = tpu.matmul %29, %30, %cst_18 {dimension_numbers = #tpu.dot_dimension_numbers<[1], [0], [0], [1], [0, 0, 1, 1], [], []>} : vector<16x128xbf16>, vector<128x128xbf16>, vector<16x128xf32> -> vector<16x128xf32>
    %c0_19 = arith.constant 0 : index
    %c0_20 = arith.constant 0 : index
    %32 = vector.load %arg7[%c0_19, %c0_20] : memref<1x128xf32, #tpu.memory_space<vmem>>, vector<1x128xf32>
    %33 = vector.broadcast %32 : vector<1x128xf32> to vector<16x128xf32>
    %34 = arith.addf %31, %33 : vector<16x128xf32>
    %c0_21 = arith.constant 0 : index
    %c0_22 = arith.constant 0 : index
    %35 = vector.load %arg8[%c0_21, %c0_22] : memref<16x128xf32, #tpu.memory_space<vmem>>, vector<16x128xf32>
    tpu.vector_store %arg8[%c0_21, %c0_22], %34 {strides = array<i32>} : memref<16x128xf32, #tpu.memory_space<vmem>>, vector<16x128xf32>,
    return
  }
  func.func @transform_0(%arg0: i32) -> (i32, i32) {
    %c0_i32 = arith.constant 0 : i32
    %c0_i32_0 = arith.constant 0 : i32
    return %arg0, %c0_i32 : i32, i32
  }
  func.func @transform_1(%arg0: i32) -> (i32, i32) {
    %c0_i32 = arith.constant 0 : i32
    %c0_i32_0 = arith.constant 0 : i32
    %c0_i32_1 = arith.constant 0 : i32
    return %c0_i32, %c0_i32_0 : i32, i32
  }
  func.func @transform_2(%arg0: i32) -> (i32, i32) {
    %c0_i32 = arith.constant 0 : i32
    %c0_i32_0 = arith.constant 0 : i32
    %c0_i32_1 = arith.constant 0 : i32
    return %c0_i32, %c0_i32_0 : i32, i32
  }
  func.func @transform_3(%arg0: i32) -> (i32, i32) {
    %c0_i32 = arith.constant 0 : i32
    %c0_i32_0 = arith.constant 0 : i32
    %c0_i32_1 = arith.constant 0 : i32
    return %c0_i32, %c0_i32_0 : i32, i32
  }
  func.func @transform_4(%arg0: i32) -> (i32, i32) {
    %c0_i32 = arith.constant 0 : i32
    %c0_i32_0 = arith.constant 0 : i32
    %c0_i32_1 = arith.constant 0 : i32
    return %c0_i32, %c0_i32_0 : i32, i32
  }
  func.func @transform_5(%arg0: i32) -> (i32, i32) {
    %c0_i32 = arith.constant 0 : i32
    %c0_i32_0 = arith.constant 0 : i32
    %c0_i32_1 = arith.constant 0 : i32
    return %c0_i32, %c0_i32_0 : i32, i32
  }
  func.func @transform_6(%arg0: i32) -> (i32, i32) {
    %c0_i32 = arith.constant 0 : i32
    %c0_i32_0 = arith.constant 0 : i32
    %c0_i32_1 = arith.constant 0 : i32
    return %c0_i32, %c0_i32_0 : i32, i32
  }
  func.func @transform_7(%arg0: i32) -> (i32, i32) {
    %c0_i32 = arith.constant 0 : i32
    %c0_i32_0 = arith.constant 0 : i32
    return %arg0, %c0_i32 : i32, i32
  }
}

</mosaic_0001>

<llo_original>
// kernel: tpu_custom_call.1
$region0: #{tpu_custom_call.1}
  #allocation0 [shape = 'u32[]', space=smem, size = 0x4, offset = 0x4, fixed_abs, tag = 'smem constant byte address 0x4 - core index']
  #allocation1 [shape = 'u32[144,128]{1,0:T(1,128)}', space=vmem, size = 0x12000, scoped, tag = 'internal scratch']
  %s0 = inlined_call_operand.hbm [shape: f32[8,128], index: 0, kind: input, shape index: {}]
  %s1 = inlined_call_operand.hbm [shape: f32[8,128], index: 1, kind: output, shape index: {}]
  %s2 = sld [smem:[#allocation0]]
  $region41: #{tpu_custom_call.1} parent=0
    _
  %s4 = ssub.s32 1, %s2
  %s5 = scalar_select 0, %s4, %s2
  $region1: #{tpu_custom_call.1} parent=0
    #allocation2 [shape = 'u8[4096]{0}', space=vmem, size = 0x1000, scoped, tag = 'input window, operand 0, single buffered']
    #allocation3 [shape = 's32[2]{0}', space=sflag, size = 0x8, scoped, tag = 'scoped memory for tpu_custom_call.1']
    #allocation4 [shape = 's32[2]{0}', space=sflag, size = 0x8, scoped, tag = 'scoped memory for tpu_custom_call.1']
    #allocation5 [shape = 'u8[4096]{0}', space=vmem, size = 0x1000, scoped, tag = 'output window, operand 0, single buffered']
    %6 = vsyncpa [#allocation3], 0
    %7 = vsyncpa [#allocation4], 0
    loop: start=0, step=1, limit=4
    $region2: #{tpu_custom_call.1} parent=1 // loop_pre_header
      _
    $region3: #{tpu_custom_call.1} parent=1 // loop_header
      %s9 = sphi 0, %s13
      %p10 = scmp.ge.s32.totalorder %s9, 4
      %s17 = sphi 0, %s17
      %s19 = sphi 0, %s17
      %s20 = sphi 0, %s19
      %s34 = sphi 0, %s20
      %s38 = sphi 0, %s38
      %s40 = sphi 0, %s38
      %s41 = sphi 0, %s40
      %s55 = sphi 0, %s41
    $region4: #{tpu_custom_call.1} parent=1 // loop_header_branch
      %12 = sbr.rel (%p10) target = $region8
    $region5: #{tpu_custom_call.1} parent=1 // loop_body
      %s14 = ssub.s32 %s9, 1
      %s15 = ssub.s32 %s9, 2
      %s16 = sadd.s32 %s9, 1
      %s18 = sadd.s32 %s17, 1
      %p21 = scmp.eq.s32.totalorder %s9, 1
      %p22 = scmp.ne.s32.totalorder %s17, %s19
      %p23 = scmp.eq.s32.totalorder %s9, 0
      %p24 = por %p22, %p23
      %p25 = scmp.ne.s32.totalorder %s17, %s19
      %p26 = scmp.eq.s32.totalorder %s14, 1
      %p27 = por %p25, %p26
      %p28 = scmp.ne.s32.totalorder %s19, %s20
      %p29 = scmp.eq.s32.totalorder %s14, 0
      %p30 = por %p28, %p29
      %p31 = scmp.ne.s32.totalorder %s19, %s20
      %p32 = scmp.eq.s32.totalorder %s15, 1
      %p33 = por %p31, %p32
      %p35 = scmp.ne.s32.totalorder %s20, %s34
      %p36 = scmp.eq.s32.totalorder %s15, 0
      %p37 = por %p35, %p36
      %s39 = sadd.s32 %s38, 1
      %p42 = scmp.eq.s32.totalorder %s9, 1
      %p43 = scmp.ne.s32.totalorder %s38, %s40
      %p44 = scmp.eq.s32.totalorder %s9, 0
      %p45 = por %p43, %p44
      %p46 = scmp.ne.s32.totalorder %s38, %s40
      %p47 = scmp.eq.s32.totalorder %s14, 1
      %p48 = por %p46, %p47
      %p49 = scmp.ne.s32.totalorder %s40, %s41
      %p50 = scmp.eq.s32.totalorder %s14, 0
      %p51 = por %p49, %p50
      %p52 = scmp.ne.s32.totalorder %s40, %s41
      %p53 = scmp.eq.s32.totalorder %s15, 1
      %p54 = por %p52, %p53
      %p56 = scmp.ne.s32.totalorder %s41, %s55
      %p57 = scmp.eq.s32.totalorder %s15, 0
      %p58 = por %p56, %p57
      %p59 = scmp.le.s32.totalorder 1, %s9
      %p60 = scmp.lt.s32.totalorder %s9, 3
      %p61 = pnand %p59, %p60
      %p62 = pneg %p61
      // Predicated region
      $region9: #{tpu_custom_call.1} parent=5 // pred_check
        _
      $region10: #{tpu_custom_call.1} parent=5 // pred_check_branch
        %64 = sbr.rel (%p61) target = $region12
      $region11: #{tpu_custom_call.1} parent=5 // pred_region
        %s65 = ssub.s32 %s9, 1
        // Predicated region
        $region13: #{tpu_custom_call.1} parent=11 // pred_check
          %p66 = pneg %p30
        $region14: #{tpu_custom_call.1} parent=11 // pred_check_branch
          %68 = sbr.rel (%p66) target = $region16
        $region15: #{tpu_custom_call.1} parent=11 // pred_region
          %s70 = ssub.s32 128, 128
          %71 = vsyncadd [#allocation3], %s70
          %s73 = sshll.u32 [#allocation2], 4
          %s74 = int_to_ptr.vmem [resolvable:$true] %s73
          %76 = dma.hbm_to_vmem [thread:$0]  %s0, 128, %s74, [#allocation3]
        $region16: #{tpu_custom_call.1} parent=11 // pred_fallthru
          _
      $region12: #{tpu_custom_call.1} parent=5 // pred_fallthru
        _
      %p77 = scmp.lt.s32.totalorder %s9, 2
      // Predicated region
      $region17: #{tpu_custom_call.1} parent=5 // pred_check
        %p78 = pneg %p77
      $region18: #{tpu_custom_call.1} parent=5 // pred_check_branch
        %80 = sbr.rel (%p78) target = $region20
      $region19: #{tpu_custom_call.1} parent=5 // pred_region
        _
      $region20: #{tpu_custom_call.1} parent=5 // pred_fallthru
        _
      %p81 = scmp.le.s32.totalorder 1, %s9
      %p82 = scmp.lt.s32.totalorder %s9, 3
      %p83 = pnand %p81, %p82
      %p84 = pneg %p83
      // Predicated region
      $region21: #{tpu_custom_call.1} parent=5 // pred_check
        _
      $region22: #{tpu_custom_call.1} parent=5 // pred_check_branch
        %86 = sbr.rel (%p83) target = $region24
      $region23: #{tpu_custom_call.1} parent=5 // pred_region
        %s87 = ssub.s32 %s9, 1
        // Predicated region
        $region25: #{tpu_custom_call.1} parent=23 // pred_check
          %p88 = pneg %p30
        $region26: #{tpu_custom_call.1} parent=23 // pred_check_branch
          %90 = sbr.rel (%p88) target = $region28
        $region27: #{tpu_custom_call.1} parent=23 // pred_region
          %91 = dma.done [#allocation3], 128
        $region28: #{tpu_custom_call.1} parent=23 // pred_fallthru
          _
        %p92 = pneg %p30
        %p93 = pneg %p27
        %p94 = pneg %p51
        %p95 = pneg %p48
        %v96 = vld [vmem:[#allocation2] sm:$0xff]
        %97 = vst [vmem:[#allocation5] sm:$0xff] %v96
        // Predicated region
        $region29: #{tpu_custom_call.1} parent=23 // pred_check
          %p98 = pneg %p48
        $region30: #{tpu_custom_call.1} parent=23 // pred_check_branch
          %100 = sbr.rel (%p98) target = $region32
        $region31: #{tpu_custom_call.1} parent=23 // pred_region
          %s102 = ssub.s32 128, 128
          %103 = vsyncadd [#allocation4], %s102
          %s105 = sshll.u32 [#allocation5], 4
          %s106 = int_to_ptr.vmem [resolvable:$true] %s105
          %108 = dma.vmem_to_hbm [thread:$0]  %s106, 128, %s1, [#allocation4]
        $region32: #{tpu_custom_call.1} parent=23 // pred_fallthru
          _
        // Predicated region
        $region33: #{tpu_custom_call.1} parent=23 // pred_check
          %p109 = pneg %p48
        $region34: #{tpu_custom_call.1} parent=23 // pred_check_branch
          %111 = sbr.rel (%p109) target = $region36
        $region35: #{tpu_custom_call.1} parent=23 // pred_region
          %112 = dma.done [#allocation4], 128
        $region36: #{tpu_custom_call.1} parent=23 // pred_fallthru
          _
      $region24: #{tpu_custom_call.1} parent=5 // pred_fallthru
        _
      %p113 = scmp.le.s32.totalorder 2, %s9
      // Predicated region
      $region37: #{tpu_custom_call.1} parent=5 // pred_check
        %p114 = pneg %p113
      $region38: #{tpu_custom_call.1} parent=5 // pred_check_branch
        %116 = sbr.rel (%p114) target = $region40
      $region39: #{tpu_custom_call.1} parent=5 // pred_region
        %s117 = ssub.s32 %s9, 2
      $region40: #{tpu_custom_call.1} parent=5 // pred_fallthru
        _
    $region6: #{tpu_custom_call.1} parent=1 // loop_footer
      %s13 = sadd.s32 1, %s9
    $region7: #{tpu_custom_call.1} parent=1 // loop_footer_branch
      %8 = sbr.rel target = $region3
    $region8: #{tpu_custom_call.1} parent=1 // loop_exit
      _
    %118 = vsyncpa [#allocation3], 1
    %s119 = scalar_lea.sflag [#allocation3], 1
    %120 = vsyncpa %s119, 1
    %121 = vsyncpa [#allocation4], 1
    %s122 = scalar_lea.sflag [#allocation4], 1
    %123 = vsyncpa %s122, 1

// kernel: mlp_forward_pallas.1
$region0: #{mlp_forward_pallas.1}
  #allocation0 [shape = 'u32[]', space=smem, size = 0x4, offset = 0x4, fixed_abs, tag = 'smem constant byte address 0x4 - core index']
  #allocation1 [shape = 'u32[144,128]{1,0:T(1,128)}', space=vmem, size = 0x12000, scoped, tag = 'internal scratch']
  %s0 = inlined_call_operand.vmem [shape: f32[16,16], index: 0, kind: input, shape index: {}]
  %s1 = inlined_call_operand.vmem [shape: bf16[16,128], index: 1, kind: input, shape index: {}]
  %s2 = inlined_call_operand.vmem [shape: f32[1,128], index: 2, kind: input, shape index: {}]
  %s3 = inlined_call_operand.hbm [shape: bf16[128,128], index: 3, kind: input, shape index: {}]
  %s4 = inlined_call_operand.vmem [shape: f32[1,128], index: 4, kind: input, shape index: {}]
  %s5 = inlined_call_operand.hbm [shape: bf16[128,128], index: 5, kind: input, shape index: {}]
  %s6 = inlined_call_operand.vmem [shape: f32[1,128], index: 6, kind: input, shape index: {}]
  %s7 = inlined_call_operand.vmem [shape: f32[16,128], index: 7, kind: output, shape index: {}]
  %s8 = sld [smem:[#allocation0]]
  $region46: #{mlp_forward_pallas.1} parent=0
    _
  %s10 = ssub.s32 1, %s8
  %s11 = scalar_select 0, %s10, %s8
  $region1: #{mlp_forward_pallas.1} parent=0
    #allocation2 [shape = 'u8[32768]{0}', space=vmem, size = 0x8000, scoped, tag = 'input window, operand 3, single buffered']
    #allocation3 [shape = 's32[1]{0}', space=sflag, size = 0x4, scoped, tag = 'scoped memory for mlp_forward_pallas.1']
    #allocation4 [shape = 'u8[32768]{0}', space=vmem, size = 0x8000, scoped, tag = 'input window, operand 5, single buffered']
    #allocation5 [shape = 's32[1]{0}', space=sflag, size = 0x4, scoped, tag = 'scoped memory for mlp_forward_pallas.1']
    %12 = vsyncpa [#allocation3], 0
    %13 = vsyncpa [#allocation5], 0
    // Predicated region
    $region2: #{mlp_forward_pallas.1} parent=1 // pred_check
      _
    $region3: #{mlp_forward_pallas.1} parent=1 // pred_check_branch
      %15 = sbr.rel (0) target = $region5
    $region4: #{mlp_forward_pallas.1} parent=1 // pred_region
      _
    $region5: #{mlp_forward_pallas.1} parent=1 // pred_fallthru
      _
    // Predicated region
    $region6: #{mlp_forward_pallas.1} parent=1 // pred_check
      _
    $region7: #{mlp_forward_pallas.1} parent=1 // pred_check_branch
      %17 = sbr.rel (0) target = $region9
    $region8: #{mlp_forward_pallas.1} parent=1 // pred_region
      _
    $region9: #{mlp_forward_pallas.1} parent=1 // pred_fallthru
      _
    // Predicated region
    $region10: #{mlp_forward_pallas.1} parent=1 // pred_check
      _
    $region11: #{mlp_forward_pallas.1} parent=1 // pred_check_branch
      %19 = sbr.rel (0) target = $region13
    $region12: #{mlp_forward_pallas.1} parent=1 // pred_region
      _
    $region13: #{mlp_forward_pallas.1} parent=1 // pred_fallthru
      _
    // Predicated region
    $region14: #{mlp_forward_pallas.1} parent=1 // pred_check
      _
    $region15: #{mlp_forward_pallas.1} parent=1 // pred_check_branch
      %21 = sbr.rel (0) target = $region17
    $region16: #{mlp_forward_pallas.1} parent=1 // pred_region
      %s23 = ssub.s32 1024, 1024
      %24 = vsyncadd [#allocation3], %s23
      %s25 = sshll.u32 [#allocation2], 4
      %s26 = int_to_ptr.vmem [resolvable:$true] %s25
      %31 = dma.hbm_to_vmem [thread:$0]  %s3, 1024, %s26, [#allocation3], 64, 64, 4
    $region17: #{mlp_forward_pallas.1} parent=1 // pred_fallthru
      _
    // Predicated region
    $region18: #{mlp_forward_pallas.1} parent=1 // pred_check
      _
    $region19: #{mlp_forward_pallas.1} parent=1 // pred_check_branch
      %33 = sbr.rel (0) target = $region21
    $region20: #{mlp_forward_pallas.1} parent=1 // pred_region
      _
    $region21: #{mlp_forward_pallas.1} parent=1 // pred_fallthru
      _
    // Predicated region
    $region22: #{mlp_forward_pallas.1} parent=1 // pred_check
      _
    $region23: #{mlp_forward_pallas.1} parent=1 // pred_check_branch
      %35 = sbr.rel (0) target = $region25
    $region24: #{mlp_forward_pallas.1} parent=1 // pred_region
      %s37 = ssub.s32 1024, 1024
      %38 = vsyncadd [#allocation5], %s37
      %s39 = sshll.u32 [#allocation4], 4
      %s40 = int_to_ptr.vmem [resolvable:$true] %s39
      %45 = dma.hbm_to_vmem [thread:$0]  %s5, 1024, %s40, [#allocation5], 64, 64, 4
    $region25: #{mlp_forward_pallas.1} parent=1 // pred_fallthru
      _
    // Predicated region
    $region26: #{mlp_forward_pallas.1} parent=1 // pred_check
      _
    $region27: #{mlp_forward_pallas.1} parent=1 // pred_check_branch
      %47 = sbr.rel (0) target = $region29
    $region28: #{mlp_forward_pallas.1} parent=1 // pred_region
      _
    $region29: #{mlp_forward_pallas.1} parent=1 // pred_fallthru
      _
    // Predicated region
    $region30: #{mlp_forward_pallas.1} parent=1 // pred_check
      _
    $region31: #{mlp_forward_pallas.1} parent=1 // pred_check_branch
      %49 = sbr.rel (0) target = $region33
    $region32: #{mlp_forward_pallas.1} parent=1 // pred_region
      %50 = dma.done [#allocation3], 1024
    $region33: #{mlp_forward_pallas.1} parent=1 // pred_fallthru
      _
    // Predicated region
    $region34: #{mlp_forward_pallas.1} parent=1 // pred_check
      _
    $region35: #{mlp_forward_pallas.1} parent=1 // pred_check_branch
      %52 = sbr.rel (0) target = $region37
    $region36: #{mlp_forward_pallas.1} parent=1 // pred_region
      %53 = dma.done [#allocation5], 1024
    $region37: #{mlp_forward_pallas.1} parent=1 // pred_fallthru
      _
    %v55 = vld [vmem:[%s0] sm:$0xff]
    %v56 = vld [vmem:[%s0 + $0x8] sm:$0xff]
    %v57 = vpack.c.bf16 %v56, %v55
    %v58 = vld [vmem:[%s1] sm:$0xf]
    %v59 = vld [vmem:[%s1 + $0x4] sm:$0xf]
    %v60 = vld [vmem:[%s2] sm:$0x1]
    %v62 = vlaneseq
    %v63 = vshrl.u32 %v62, 7
    %v64 = vsub.s32 0, %v63
    %v65 = vrot.slane %v60, %v64
    %v69 = vunpack.c.l.b16 %v58
    %v70 = vunpack.c.l.b16 %v59
    %v71 = vpack.c.b16 %v70, %v69
    %vm73 = vcmask 130048
    %v75 = vsel %vm73, %v57, 0
    %77 = vmatprep.subr.bf16.mxu0 0
    %78 = vmatpush1.bf16.msra.mxu0 0
    %79 = vmatprep.subr.bf16.mxu0 0
    %80 = vmatpush1.bf16.msra.mxu0 0
    %81 = vmatprep.subr.bf16.mxu0 0
    %82 = vmatpush1.bf16.msra.mxu0 0
    %83 = vmatprep.subr.bf16.mxu0 0
    %84 = vmatpush1.bf16.msra.mxu0 0
    %85 = vmatprep.subr.bf16.mxu0 0
    %86 = vmatpush1.bf16.msra.mxu0 0
    %87 = vmatprep.subr.bf16.mxu0 0
    %88 = vmatpush1.bf16.msra.mxu0 0
    %89 = vmatprep.subr.bf16.mxu0 0
    %90 = vmatpush1.bf16.msra.mxu0 0
    %91 = vmatprep.subr.bf16.mxu0 0
    %92 = vmatpush1.bf16.msra.mxu0 %v71
    %93 = vmatprep.subr.bf16.mxu0 0
    %94 = vmatpush2.bf16.msra.mxu0 0
    %95 = vmatprep.subr.bf16.mxu0 0
    %96 = vmatpush2.bf16.msra.mxu0 0
    %97 = vmatprep.subr.bf16.mxu0 0
    %98 = vmatpush2.bf16.msra.mxu0 0
    %99 = vmatprep.subr.bf16.mxu0 0
    %100 = vmatpush2.bf16.msra.mxu0 0
    %101 = vmatprep.subr.bf16.mxu0 0
    %102 = vmatpush2.bf16.msra.mxu0 0
    %103 = vmatprep.subr.bf16.mxu0 0
    %104 = vmatpush2.bf16.msra.mxu0 0
    %105 = vmatprep.subr.bf16.mxu0 0
    %106 = vmatpush2.bf16.msra.mxu0 0
    %107 = vmatprep.subr.bf16.mxu0 0
    %108 = vmatpush2.bf16.msra.mxu0 0
    %109 = vmatprep.mubr.bf16.mxu0 0
    %110 = vmatmul.mubr.bf16.gmra.mxu0 %v75
    %v111 = vpop.f32.mrf.mxu0
    %v112 = vadd.f32 %v65, %v111
    %v113 = vpop.f32.mrf.mxu0
    %v114 = vpop.f32.mrf.mxu0
    %v115 = vadd.f32 %v65, %v114
    %v116 = vpop.f32.mrf.mxu0
    %117 = vdwg.mxu0
    %v118 = vmul.f32 %v112, 0.5
    %v119 = vmul.f32 %v115, 0.5
    %v120 = vtanh.pop %v118
    %v121 = vtanh.pop %v119
    %v122 = vmul.f32 %v120, 0.5
    %v123 = vmul.f32 %v121, 0.5
    %v124 = vadd.f32 %v122, 0.5
    %v125 = vadd.f32 %v123, 0.5
    %v126 = vmul.f32 %v112, %v124
    %v127 = vmul.f32 %v115, %v125
    %v128 = vpack.c.bf16 %v127, %v126
    %v129 = vld [vmem:[#allocation2] sm:$0xf]
    %v130 = vld [vmem:[#allocation2 + $0x4] sm:$0xf]
    %v131 = vld [vmem:[#allocation2 + $0x8] sm:$0xf]
    %v132 = vld [vmem:[#allocation2 + $0xc] sm:$0xf]
    %v133 = vld [vmem:[#allocation2 + $0x10] sm:$0xf]
    %v134 = vld [vmem:[#allocation2 + $0x14] sm:$0xf]
    %v135 = vld [vmem:[#allocation2 + $0x18] sm:$0xf]
    %v136 = vld [vmem:[#allocation2 + $0x1c] sm:$0xf]
    %v137 = vld [vmem:[#allocation2 + $0x20] sm:$0xf]
    %v138 = vld [vmem:[#allocation2 + $0x24] sm:$0xf]
    %v139 = vld [vmem:[#allocation2 + $0x28] sm:$0xf]
    %v140 = vld [vmem:[#allocation2 + $0x2c] sm:$0xf]
    %v141 = vld [vmem:[#allocation2 + $0x30] sm:$0xf]
    %v142 = vld [vmem:[#allocation2 + $0x34] sm:$0xf]
    %v143 = vld [vmem:[#allocation2 + $0x38] sm:$0xf]
    %v144 = vld [vmem:[#allocation2 + $0x3c] sm:$0xf]
    %v145 = vld [vmem:[%s4] sm:$0x1]
    %v147 = vlaneseq
    %v148 = vshrl.u32 %v147, 7
    %v149 = vsub.s32 0, %v148
    %v150 = vrot.slane %v145, %v149
    %v168 = vunpack.c.l.b16 %v129
    %v169 = vunpack.c.l.b16 %v130
    %v170 = vunpack.c.l.b16 %v131
    %v171 = vunpack.c.l.b16 %v132
    %v172 = vunpack.c.l.b16 %v133
    %v173 = vunpack.c.l.b16 %v134
    %v174 = vunpack.c.l.b16 %v135
    %v175 = vunpack.c.l.b16 %v136
    %v176 = vunpack.c.l.b16 %v137
    %v177 = vunpack.c.l.b16 %v138
    %v178 = vunpack.c.l.b16 %v139
    %v179 = vunpack.c.l.b16 %v140
    %v180 = vunpack.c.l.b16 %v141
    %v181 = vunpack.c.l.b16 %v142
    %v182 = vunpack.c.l.b16 %v143
    %v183 = vunpack.c.l.b16 %v144
    %v184 = vpack.c.b16 %v169, %v168
    %v185 = vpack.c.b16 %v171, %v170
    %v186 = vpack.c.b16 %v173, %v172
    %v187 = vpack.c.b16 %v175, %v174
    %v188 = vpack.c.b16 %v177, %v176
    %v189 = vpack.c.b16 %v179, %v178
    %v190 = vpack.c.b16 %v181, %v180
    %v191 = vpack.c.b16 %v183, %v182
    %200 = vmatprep.subr.bf16.mxu0 0
    %201 = vmatpush1.bf16.msra.mxu0 %v191
    %202 = vmatprep.subr.bf16.mxu0 0
    %203 = vmatpush1.bf16.msra.mxu0 %v190
    %204 = vmatprep.subr.bf16.mxu0 0
    %205 = vmatpush1.bf16.msra.mxu0 %v189
    %206 = vmatprep.subr.bf16.mxu0 0
    %207 = vmatpush1.bf16.msra.mxu0 %v188
    %208 = vmatprep.subr.bf16.mxu0 0
    %209 = vmatpush1.bf16.msra.mxu0 %v187
    %210 = vmatprep.subr.bf16.mxu0 0
    %211 = vmatpush1.bf16.msra.mxu0 %v186
    %212 = vmatprep.subr.bf16.mxu0 0
    %213 = vmatpush1.bf16.msra.mxu0 %v185
    %214 = vmatprep.subr.bf16.mxu0 0
    %215 = vmatpush1.bf16.msra.mxu0 %v184
    %216 = vmatprep.subr.bf16.mxu0 0
    %217 = vmatpush2.bf16.msra.mxu0 0
    %218 = vmatprep.subr.bf16.mxu0 0
    %219 = vmatpush2.bf16.msra.mxu0 0
    %220 = vmatprep.subr.bf16.mxu0 0
    %221 = vmatpush2.bf16.msra.mxu0 0
    %222 = vmatprep.subr.bf16.mxu0 0
    %223 = vmatpush2.bf16.msra.mxu0 0
    %224 = vmatprep.subr.bf16.mxu0 0
    %225 = vmatpush2.bf16.msra.mxu0 0
    %226 = vmatprep.subr.bf16.mxu0 0
    %227 = vmatpush2.bf16.msra.mxu0 0
    %228 = vmatprep.subr.bf16.mxu0 0
    %229 = vmatpush2.bf16.msra.mxu0 0
    %230 = vmatprep.subr.bf16.mxu0 0
    %231 = vmatpush2.bf16.msra.mxu0 0
    %232 = vmatprep.mubr.bf16.mxu0 0
    %233 = vmatmul.mubr.bf16.gmra.mxu0 %v128
    %v234 = vpop.f32.mrf.mxu0
    %v235 = vadd.f32 %v150, %v234
    %v236 = vpop.f32.mrf.mxu0
    %v237 = vpop.f32.mrf.mxu0
    %v238 = vadd.f32 %v150, %v237
    %v239 = vpop.f32.mrf.mxu0
    %240 = vdwg.mxu0
    %v241 = vmul.f32 %v235, 0.5
    %v242 = vmul.f32 %v238, 0.5
    %v243 = vtanh.pop %v241
    %v244 = vtanh.pop %v242
    %v245 = vmul.f32 %v243, 0.5
    %v246 = vmul.f32 %v244, 0.5
    %v247 = vadd.f32 %v245, 0.5
    %v248 = vadd.f32 %v246, 0.5
    %v249 = vmul.f32 %v235, %v247
    %v250 = vmul.f32 %v238, %v248
    %v251 = vpack.c.bf16 %v250, %v249
    %v252 = vld [vmem:[#allocation4] sm:$0xf]
    %v253 = vld [vmem:[#allocation4 + $0x4] sm:$0xf]
    %v254 = vld [vmem:[#allocation4 + $0x8] sm:$0xf]
    %v255 = vld [vmem:[#allocation4 + $0xc] sm:$0xf]
    %v256 = vld [vmem:[#allocation4 + $0x10] sm:$0xf]
    %v257 = vld [vmem:[#allocation4 + $0x14] sm:$0xf]
    %v258 = vld [vmem:[#allocation4 + $0x18] sm:$0xf]
    %v259 = vld [vmem:[#allocation4 + $0x1c] sm:$0xf]
    %v260 = vld [vmem:[#allocation4 + $0x20] sm:$0xf]
    %v261 = vld [vmem:[#allocation4 + $0x24] sm:$0xf]
    %v262 = vld [vmem:[#allocation4 + $0x28] sm:$0xf]
    %v263 = vld [vmem:[#allocation4 + $0x2c] sm:$0xf]
    %v264 = vld [vmem:[#allocation4 + $0x30] sm:$0xf]
    %v265 = vld [vmem:[#allocation4 + $0x34] sm:$0xf]
    %v266 = vld [vmem:[#allocation4 + $0x38] sm:$0xf]
    %v267 = vld [vmem:[#allocation4 + $0x3c] sm:$0xf]
    %v268 = vld [vmem:[%s6] sm:$0x1]
    %v270 = vlaneseq
    %v271 = vshrl.u32 %v270, 7
    %v272 = vsub.s32 0, %v271
    %v273 = vrot.slane %v268, %v272
    %v291 = vunpack.c.l.b16 %v252
    %v292 = vunpack.c.l.b16 %v253
    %v293 = vunpack.c.l.b16 %v254
    %v294 = vunpack.c.l.b16 %v255
    %v295 = vunpack.c.l.b16 %v256
    %v296 = vunpack.c.l.b16 %v257
    %v297 = vunpack.c.l.b16 %v258
    %v298 = vunpack.c.l.b16 %v259
    %v299 = vunpack.c.l.b16 %v260
    %v300 = vunpack.c.l.b16 %v261
    %v301 = vunpack.c.l.b16 %v262
    %v302 = vunpack.c.l.b16 %v263
    %v303 = vunpack.c.l.b16 %v264
    %v304 = vunpack.c.l.b16 %v265
    %v305 = vunpack.c.l.b16 %v266
    %v306 = vunpack.c.l.b16 %v267
    %v307 = vpack.c.b16 %v292, %v291
    %v308 = vpack.c.b16 %v294, %v293
    %v309 = vpack.c.b16 %v296, %v295
    %v310 = vpack.c.b16 %v298, %v297
    %v311 = vpack.c.b16 %v300, %v299
    %v312 = vpack.c.b16 %v302, %v301
    %v313 = vpack.c.b16 %v304, %v303
    %v314 = vpack.c.b16 %v306, %v305
    %323 = vmatprep.subr.bf16.mxu0 0
    %324 = vmatpush1.bf16.msra.mxu0 %v314
    %325 = vmatprep.subr.bf16.mxu0 0
    %326 = vmatpush1.bf16.msra.mxu0 %v313
    %327 = vmatprep.subr.bf16.mxu0 0
    %328 = vmatpush1.bf16.msra.mxu0 %v312
    %329 = vmatprep.subr.bf16.mxu0 0
    %330 = vmatpush1.bf16.msra.mxu0 %v311
    %331 = vmatprep.subr.bf16.mxu0 0
    %332 = vmatpush1.bf16.msra.mxu0 %v310
    %333 = vmatprep.subr.bf16.mxu0 0
    %334 = vmatpush1.bf16.msra.mxu0 %v309
    %335 = vmatprep.subr.bf16.mxu0 0
    %336 = vmatpush1.bf16.msra.mxu0 %v308
    %337 = vmatprep.subr.bf16.mxu0 0
    %338 = vmatpush1.bf16.msra.mxu0 %v307
    %339 = vmatprep.subr.bf16.mxu0 0
    %340 = vmatpush2.bf16.msra.mxu0 0
    %341 = vmatprep.subr.bf16.mxu0 0
    %342 = vmatpush2.bf16.msra.mxu0 0
    %343 = vmatprep.subr.bf16.mxu0 0
    %344 = vmatpush2.bf16.msra.mxu0 0
    %345 = vmatprep.subr.bf16.mxu0 0
    %346 = vmatpush2.bf16.msra.mxu0 0
    %347 = vmatprep.subr.bf16.mxu0 0
    %348 = vmatpush2.bf16.msra.mxu0 0
    %349 = vmatprep.subr.bf16.mxu0 0
    %350 = vmatpush2.bf16.msra.mxu0 0
    %351 = vmatprep.subr.bf16.mxu0 0
    %352 = vmatpush2.bf16.msra.mxu0 0
    %353 = vmatprep.subr.bf16.mxu0 0
    %354 = vmatpush2.bf16.msra.mxu0 0
    %355 = vmatprep.mubr.bf16.mxu0 0
    %356 = vmatmul.mubr.bf16.gmra.mxu0 %v251
    %v357 = vpop.f32.mrf.mxu0
    %v358 = vadd.f32 %v273, %v357
    %v359 = vpop.f32.mrf.mxu0
    %v360 = vpop.f32.mrf.mxu0
    %v361 = vadd.f32 %v273, %v360
    %v362 = vpop.f32.mrf.mxu0
    %363 = vdwg.mxu0
    %364 = vst [vmem:[%s7] sm:$0xff] %v358
    %365 = vst [vmem:[%s7 + $0x8] sm:$0xff] %v361
    // Predicated region
    $region38: #{mlp_forward_pallas.1} parent=1 // pred_check
      _
    $region39: #{mlp_forward_pallas.1} parent=1 // pred_check_branch
      %367 = sbr.rel (0) target = $region41
    $region40: #{mlp_forward_pallas.1} parent=1 // pred_region
      _
    $region41: #{mlp_forward_pallas.1} parent=1 // pred_fallthru
      _
    // Predicated region
    $region42: #{mlp_forward_pallas.1} parent=1 // pred_check
      _
    $region43: #{mlp_forward_pallas.1} parent=1 // pred_check_branch
      %369 = sbr.rel (0) target = $region45
    $region44: #{mlp_forward_pallas.1} parent=1 // pred_region
      _
    $region45: #{mlp_forward_pallas.1} parent=1 // pred_fallthru
      _
    %370 = vsyncpa [#allocation3], 1
    %371 = vsyncpa [#allocation5], 1

</llo_original>
